<compile_context>
chip_gen: v5e
topology: v5e:2x2
jax: 0.10.0
libtpu: 0.0.40
codegen_flags: <defaults>
</compile_context>

<pallas_src>
import functools

import jax
import jax.numpy as jnp
import numpy as np
from jax.experimental import pallas as pl
from jax.experimental.pallas import tpu as pltpu


# ----------------------------- Pallas kernel ---------------------------------
def _one_side_kernel(num_head, use_bf16,
                     src_ref, tgt_ref,
                     smask_col_ref, smask_row_ref, tmask_col_ref,
                     wsrc_ref, bsrc_ref,
                     wtgt_ref, btgt_ref,
                     wouta_ref, woutb_ref, bout_ref,
                     out_ref):
    Bb, S, Ds = src_ref.shape
    _, T, Dt = tgt_ref.shape
    M2 = wsrc_ref.shape[1]          # 2 * output_size
    M = M2 // 2                     # output_size
    H = num_head
    Dh = M // H

    dot_dtype = jnp.bfloat16 if use_bf16 else jnp.float32

    # ---- linear projections: batch folded into the sublane dim --------------
    src2d = src_ref[...].reshape(Bb * S, Ds).astype(dot_dtype)
    tgt2d = tgt_ref[...].reshape(Bb * T, Dt).astype(dot_dtype)   # raw tgt rows

    src_trans = (jnp.dot(src2d, wsrc_ref[...].astype(dot_dtype),
                         preferred_element_type=jnp.float32)
                 + bsrc_ref[...]).reshape(Bb, S, M2)
    # w_tgt / b_tgt arrive pre-scaled by 1/sqrt(head_dim) from the wrapper, so
    # no per-score scale multiply is needed below.
    tgt_trans = (jnp.dot(tgt2d, wtgt_ref[...].astype(dot_dtype),
                         preferred_element_type=jnp.float32)
                 + btgt_ref[...]).reshape(Bb, T, M)

    src_trans = src_trans * smask_col_ref[...]   # APPLY_MASK on src projection
    tgt_trans = tgt_trans * tmask_col_ref[...]   # APPLY_MASK on tgt projection

    # ---- hoisted (per-step, not per-head) casts / broadcasts -----------------
    src_key = src_trans[:, :, :M].astype(dot_dtype)    # [Bb, S, M] (128-aligned)
    src_val = src_trans[:, :, M:].astype(dot_dtype)    # [Bb, S, M] (128-aligned)
    tgt_qry = tgt_trans.astype(dot_dtype)              # [Bb, T, M]
    score_mask = smask_row_ref[...] > 0                # [Bb, 1, S] bool
    w_out_b = woutb_ref[...].astype(dot_dtype)         # [M, M]
    neg = jnp.float32(-1e30)

    # ---- output projection part 1: raw tgt rows (no concat) ------------------
    acc = (jnp.dot(tgt2d, wouta_ref[...].astype(dot_dtype),
                   preferred_element_type=jnp.float32)
           + bout_ref[...])                            # [Bb*T, M] f32

    # ---- multi-head masked cross attention, accumulated into the output ------
    # cat_h(upd_h) @ w_out_b == sum_h upd_h @ w_out_b[h*Dh:(h+1)*Dh]  -> no concat
    for h in range(H):
        lo = h * Dh
        q_h = tgt_qry[:, :, lo:lo + Dh]                # [Bb, T, Dh]
        k_h = src_key[:, :, lo:lo + Dh]                # [Bb, S, Dh]
        v_h = src_val[:, :, lo:lo + Dh]                # [Bb, S, Dh]

        # scores[b, t, s] = <q_h[b,t], k_h[b,s]>  (scale already folded in)
        s = jnp.einsum('btd,bsd->bts', q_h, k_h,
                       preferred_element_type=jnp.float32)
        s = jnp.where(score_mask, s, neg)              # masked_fill

        # numerically-stable softmax over src axis; divide goes to the EUP slot
        s = s - jnp.max(s, axis=-1, keepdims=True)
        p = jnp.exp(s)
        p = p * pl.reciprocal(jnp.sum(p, axis=-1, keepdims=True), approx=True)

        upd = jnp.einsum('bts,bsd->btd', p.astype(dot_dtype), v_h,
                         preferred_element_type=jnp.float32)   # [Bb, T, Dh]
        wb_h = w_out_b[lo:lo + Dh, :]                  # [Dh, M] sublane-aligned
        acc = acc + jnp.dot(upd.reshape(Bb * T, Dh).astype(dot_dtype), wb_h,
                            preferred_element_type=jnp.float32)

    out_ref[...] = acc.reshape(Bb, T, M).astype(out_ref.dtype)


# ----------------------------- wrapper ----------------------------------------
def _tensorcores_per_chip():
    try:
        kind = jax.devices()[0].device_kind.lower()
    except Exception:
        return 1
    return 2 if 'v7' in kind else 1


def one_side_inter_modality_update(src, tgt, src_mask, tgt_mask, params,
                                   *, num_head, b_blk=None, use_bf16=True,
                                   out_dtype=jnp.float32):
    """Pallas-backed OneSideInterModalityUpdate.forward -> [B, num_tgt, output_size]."""
    B, S, Ds = src.shape
    _, T, Dt = tgt.shape
    M2 = params['w_src'].shape[1]
    M = M2 // 2
    assert M % num_head == 0, "output_size must be divisible by num_head"
    assert M % 128 == 0, "output_size must be a multiple of 128 (lane-dense out)"
    head_dim = M // num_head

    if b_blk is None:
        # Chip-aware: v5e/v6e have one TensorCore, so the grid is a sequential
        # loop -> one step folding the whole batch.  v7x has 2 TCs -> >=2
        # "parallel" steps so both cores get work.
        if _tensorcores_per_chip() > 1 and B >= 2 and B % 2 == 0:
            b_blk = B // 2
        else:
            b_blk = B
    assert B % b_blk == 0, "demo requires B divisible by b_blk"
    grid = (B // b_blk,)

    # Fold 1/sqrt(head_dim) into the (static) query weights once — free,
    # removes the per-score multiply from the kernel.
    scale = jnp.float32(1.0 / np.sqrt(head_dim))
    w_tgt = params['w_tgt'] * scale
    b_tgt = params['b_tgt'] * scale
    # Split the output projection so the lane-misaligned cat(tgt, tgt_update)
    # never exists: out = tgt @ w_out_a + tgt_update @ w_out_b + b_out.
    w_out_a = params['w_out'][:Dt]      # [Dt, M]
    w_out_b = params['w_out'][Dt:]      # [M, M]

    src_mask = src_mask.astype(jnp.float32)
    tgt_mask = tgt_mask.astype(jnp.float32)
    # Pre-shape masks so no in-kernel transposes are needed and every BlockSpec's
    # trailing dims equal the full array dims.
    smask_col = src_mask[:, :, None]      # [B, S, 1]
    smask_row = src_mask[:, None, :]      # [B, 1, S]
    tmask_col = tgt_mask[:, :, None]      # [B, T, 1]

    def act_spec(shape):
        return pl.BlockSpec((b_blk,) + shape, lambda i: (i, 0, 0))

    def w_spec(shape):
        return pl.BlockSpec(shape, lambda i: (0, 0))

    kernel = functools.partial(_one_side_kernel, num_head, use_bf16)

    # NOTE: at production widths set pltpu.CompilerParams(vmem_limit_bytes=...)
    # (16 MiB scoped default on v5e, 32 MiB on v6e/v7x; 64 MiB physical per TC
    # on v7x) and consider pipeline_mode=pl.Buffered(1) on the grid-invariant
    # weight specs.  At these demo sizes the defaults are ample.
    return pl.pallas_call(
        kernel,
        out_shape=jax.ShapeDtypeStruct((B, T, M), out_dtype),
        grid=grid,
        in_specs=[
            act_spec((S, Ds)),            # src
            act_spec((T, Dt)),            # tgt
            act_spec((S, 1)),             # src_mask (column form)
            act_spec((1, S)),             # src_mask (row form, score masking)
            act_spec((T, 1)),             # tgt_mask (column form)
            w_spec((Ds, M2)), w_spec((1, M2)),     # w_src, b_src
            w_spec((Dt, M)), w_spec((1, M)),       # w_tgt, b_tgt (pre-scaled)
            w_spec((Dt, M)), w_spec((M, M)),       # w_out_a, w_out_b
            w_spec((1, M)),                        # b_out
        ],
        out_specs=act_spec((T, M)),       # lane-dense: M % 128 == 0
        compiler_params=pltpu.CompilerParams(
            dimension_semantics=("parallel",),
        ),
    )(src, tgt, smask_col, smask_row, tmask_col,
      params['w_src'], params['b_src'],
      w_tgt, b_tgt,
      w_out_a, w_out_b, params['b_out'])


# ----------------------------- pure-JAX reference -----------------------------
def one_side_ref(src, tgt, src_mask, tgt_mask, params, *, num_head):
    M2 = params['w_src'].shape[1]
    M = M2 // 2
    head_dim = M // num_head

    src_trans = src @ params['w_src'] + params['b_src']
    tgt_trans = tgt @ params['w_tgt'] + params['b_tgt']
    src_trans = src_trans * src_mask[:, :, None]
    tgt_trans = tgt_trans * tgt_mask[:, :, None]

    src_key, src_val = src_trans[..., :M], src_trans[..., M:]
    tgt_qry = tgt_trans

    upds = []
    for h in range(num_head):
        lo = h * head_dim
        k = src_key[..., lo:lo + head_dim]
        v = src_val[..., lo:lo + head_dim]
        q = tgt_qry[..., lo:lo + head_dim]
        s = jnp.einsum('btd,bsd->bts', q, k) / np.sqrt(head_dim)
        s = jnp.where(src_mask[:, None, :] > 0, s, -1e30)
        p = jax.nn.softmax(s, axis=-1)
        upds.append(jnp.einsum('bts,bsd->btd', p, v))
    tgt_update = jnp.concatenate(upds, axis=-1)

    cat = jnp.concatenate([tgt, tgt_update], axis=-1)
    return cat @ params['w_out'] + params['b_out']


# ----------------------------- parameter setup --------------------------------
def init_params(key, src_size, tgt_size, output_size):
    ks = jax.random.split(key, 6)

    def lin(kw, kb, n_in, n_out):
        w = jax.random.normal(kw, (n_in, n_out), jnp.float32) / np.sqrt(n_in)
        b = jax.random.normal(kb, (1, n_out), jnp.float32) * 0.01
        return w, b

    w_src, b_src = lin(ks[0], ks[1], src_size, output_size * 2)
    w_tgt, b_tgt = lin(ks[2], ks[3], tgt_size, output_size)
    w_out, b_out = lin(ks[4], ks[5], output_size + tgt_size, output_size)
    return dict(w_src=w_src, b_src=b_src,
                w_tgt=w_tgt, b_tgt=b_tgt,
                w_out=w_out, b_out=b_out)


if __name__ == "__main__":
    B, S, T = 2, 8, 8                       # batch, num_src, num_tgt
    src_size, tgt_size = 32, 32
    output_size, num_head = 128, 4          # 128 -> lane-dense output last dim

    key = jax.random.PRNGKey(0)
    ks = jax.random.split(key, 3)
    src = jax.random.normal(ks[0], (B, S, src_size), jnp.float32)
    tgt = jax.random.normal(ks[1], (B, T, tgt_size), jnp.float32)
    # Partially-masked inputs to exercise APPLY_MASK paths.
    src_mask = jnp.ones((B, S), jnp.float32).at[:, -2:].set(0.0)
    tgt_mask = jnp.ones((B, T), jnp.float32).at[:, -1:].set(0.0)

    params = init_params(ks[2], src_size, tgt_size, output_size)

    fwd = jax.jit(one_side_inter_modality_update,
                  static_argnames=('num_head', 'b_blk', 'use_bf16', 'out_dtype'))

    ref = one_side_ref(src, tgt, src_mask, tgt_mask, params, num_head=num_head)

    # f32 path, chip-aware default b_blk.
    out_f32 = jax.block_until_ready(
        fwd(src, tgt, src_mask, tgt_mask, params,
            num_head=num_head, use_bf16=False))
    np.testing.assert_allclose(np.asarray(out_f32), np.asarray(ref),
                               rtol=1e-2, atol=1e-2)

    # multi-step grid path (b_blk=1 -> 2 grid steps).
    out_split = jax.block_until_ready(
        fwd(src, tgt, src_mask, tgt_mask, params,
            num_head=num_head, b_blk=1, use_bf16=False))
    np.testing.assert_allclose(np.asarray(out_split), np.asarray(ref),
                               rtol=1e-2, atol=1e-2)

    # bf16-fed MXU path (looser tolerance for reduced-precision operands).
    out_bf16 = jax.block_until_ready(
        fwd(src, tgt, src_mask, tgt_mask, params,
            num_head=num_head, use_bf16=True))
    np.testing.assert_allclose(np.asarray(out_bf16), np.asarray(ref),
                               rtol=5e-2, atol=5e-2)

    # bf16 output writeback (halves output HBM bytes; still lane-dense).
    out_bf16_o = jax.block_until_ready(
        fwd(src, tgt, src_mask, tgt_mask, params,
            num_head=num_head, use_bf16=True, out_dtype=jnp.bfloat16))
    np.testing.assert_allclose(np.asarray(out_bf16_o, dtype=np.float32),
                               np.asarray(ref), rtol=6e-2, atol=6e-2)

    print("KERNEL_OK")
</pallas_src>

<mosaic_0001>
module attributes {stable_mosaic.version = 11 : i64} {
  func.func @_one_side_kernel(%arg0: i32, %arg1: memref<2x8x32xf32, #tpu.memory_space<vmem>>, %arg2: memref<2x8x32xf32, #tpu.memory_space<vmem>>, %arg3: memref<2x8x1xf32, #tpu.memory_space<vmem>>, %arg4: memref<2x1x8xf32, #tpu.memory_space<vmem>>, %arg5: memref<2x8x1xf32, #tpu.memory_space<vmem>>, %arg6: memref<32x256xf32, #tpu.memory_space<vmem>>, %arg7: memref<1x256xf32, #tpu.memory_space<vmem>>, %arg8: memref<32x128xf32, #tpu.memory_space<vmem>>, %arg9: memref<1x128xf32, #tpu.memory_space<vmem>>, %arg10: memref<32x128xf32, #tpu.memory_space<vmem>>, %arg11: memref<128x128xf32, #tpu.memory_space<vmem>>, %arg12: memref<1x128xf32, #tpu.memory_space<vmem>>, %arg13: memref<2x8x128xf32, #tpu.memory_space<vmem>>) attributes {dimension_semantics = [#tpu.dimension_semantics<parallel>], iteration_bounds = array<i64: 1>, scalar_prefetch = 0 : i64, scratch_operands = 0 : i64, tpu.core_type = #tpu.core_type<tc>, window_params = [{transform_indices = @transform_0, window_bounds = array<i64: 2, 8, 32>}, {transform_indices = @transform_1, window_bounds = array<i64: 2, 8, 32>}, {transform_indices = @transform_2, window_bounds = array<i64: 2, 8, 1>}, {transform_indices = @transform_3, window_bounds = array<i64: 2, 1, 8>}, {transform_indices = @transform_4, window_bounds = array<i64: 2, 8, 1>}, {pipeline_mode = #tpu.pipeline_mode<synchronous>, transform_indices = @transform_5, window_bounds = array<i64: 32, 256>}, {pipeline_mode = #tpu.pipeline_mode<synchronous>, transform_indices = @transform_6, window_bounds = array<i64: 1, 256>}, {pipeline_mode = #tpu.pipeline_mode<synchronous>, transform_indices = @transform_7, window_bounds = array<i64: 32, 128>}, {pipeline_mode = #tpu.pipeline_mode<synchronous>, transform_indices = @transform_8, window_bounds = array<i64: 1, 128>}, {pipeline_mode = #tpu.pipeline_mode<synchronous>, transform_indices = @transform_9, window_bounds = array<i64: 32, 128>}, {pipeline_mode = #tpu.pipeline_mode<synchronous>, transform_indices = @transform_10, window_bounds = array<i64: 128, 128>}, {pipeline_mode = #tpu.pipeline_mode<synchronous>, transform_indices = @transform_11, window_bounds = array<i64: 1, 128>}, {transform_indices = @transform_12, window_bounds = array<i64: 2, 8, 128>}]} {
    %c0 = arith.constant 0 : index
    %c0_0 = arith.constant 0 : index
    %c0_1 = arith.constant 0 : index
    %0 = vector.load %arg1[%c0, %c0_0, %c0_1] : memref<2x8x32xf32, #tpu.memory_space<vmem>>, vector<2x8x32xf32>
    %1 = vector.shape_cast %0 : vector<2x8x32xf32> to vector<16x32xf32>
    %c0_2 = arith.constant 0 : index
    %c0_3 = arith.constant 0 : index
    %c0_4 = arith.constant 0 : index
    %2 = vector.load %arg2[%c0_2, %c0_3, %c0_4] : memref<2x8x32xf32, #tpu.memory_space<vmem>>, vector<2x8x32xf32>
    %3 = vector.shape_cast %2 : vector<2x8x32xf32> to vector<16x32xf32>
    %c0_5 = arith.constant 0 : index
    %c0_6 = arith.constant 0 : index
    %4 = vector.load %arg6[%c0_5, %c0_6] : memref<32x256xf32, #tpu.memory_space<vmem>>, vector<32x256xf32>
    %cst = arith.constant dense<0.000000e+00> : vector<16x256xf32>
    %5 = tpu.matmul %1, %4, %cst {dimension_numbers = #tpu.dot_dimension_numbers<[1], [0], [0], [1], [0, 0, 1, 1], [], []>} : vector<16x32xf32>, vector<32x256xf32>, vector<16x256xf32> -> vector<16x256xf32>
    %c0_7 = arith.constant 0 : index
    %c0_8 = arith.constant 0 : index
    %6 = vector.load %arg7[%c0_7, %c0_8] : memref<1x256xf32, #tpu.memory_space<vmem>>, vector<1x256xf32>
    %7 = vector.broadcast %6 : vector<1x256xf32> to vector<16x256xf32>
    %8 = arith.addf %5, %7 : vector<16x256xf32>
    %9 = vector.shape_cast %8 : vector<16x256xf32> to vector<2x8x256xf32>
    %c0_9 = arith.constant 0 : index
    %c0_10 = arith.constant 0 : index
    %10 = vector.load %arg8[%c0_9, %c0_10] : memref<32x128xf32, #tpu.memory_space<vmem>>, vector<32x128xf32>
    %cst_11 = arith.constant dense<0.000000e+00> : vector<16x128xf32>
    %11 = tpu.matmul %3, %10, %cst_11 {dimension_numbers = #tpu.dot_dimension_numbers<[1], [0], [0], [1], [0, 0, 1, 1], [], []>} : vector<16x32xf32>, vector<32x128xf32>, vector<16x128xf32> -> vector<16x128xf32>
    %c0_12 = arith.constant 0 : index
    %c0_13 = arith.constant 0 : index
    %12 = vector.load %arg9[%c0_12, %c0_13] : memref<1x128xf32, #tpu.memory_space<vmem>>, vector<1x128xf32>
    %13 = vector.broadcast %12 : vector<1x128xf32> to vector<16x128xf32>
    %14 = arith.addf %11, %13 : vector<16x128xf32>
    %15 = vector.shape_cast %14 : vector<16x128xf32> to vector<2x8x128xf32>
    %c0_14 = arith.constant 0 : index
    %c0_15 = arith.constant 0 : index
    %c0_16 = arith.constant 0 : index
    %16 = vector.load %arg3[%c0_14, %c0_15, %c0_16] : memref<2x8x1xf32, #tpu.memory_space<vmem>>, vector<2x8x1xf32>
    %17 = vector.broadcast %16 : vector<2x8x1xf32> to vector<2x8x256xf32>
    %18 = arith.mulf %9, %17 : vector<2x8x256xf32>
    %c0_17 = arith.constant 0 : index
    %c0_18 = arith.constant 0 : index
    %c0_19 = arith.constant 0 : index
    %19 = vector.load %arg5[%c0_17, %c0_18, %c0_19] : memref<2x8x1xf32, #tpu.memory_space<vmem>>, vector<2x8x1xf32>
    %20 = vector.broadcast %19 : vector<2x8x1xf32> to vector<2x8x128xf32>
    %21 = arith.mulf %15, %20 : vector<2x8x128xf32>
    %22 = vector.extract_strided_slice %18 {offsets = [0, 0, 0], sizes = [2, 8, 128], strides = [1, 1, 1]} : vector<2x8x256xf32> to vector<2x8x128xf32>
    %23 = vector.extract_strided_slice %18 {offsets = [0, 0, 128], sizes = [2, 8, 128], strides = [1, 1, 1]} : vector<2x8x256xf32> to vector<2x8x128xf32>
    %c0_20 = arith.constant 0 : index
    %c0_21 = arith.constant 0 : index
    %c0_22 = arith.constant 0 : index
    %24 = vector.load %arg4[%c0_20, %c0_21, %c0_22] : memref<2x1x8xf32, #tpu.memory_space<vmem>>, vector<2x1x8xf32>
    %cst_23 = arith.constant 0.000000e+00 : f32
    %25 = vector.broadcast %cst_23 : f32 to vector<2x1x8xf32>
    %26 = arith.cmpf ogt, %24, %25 : vector<2x1x8xf32>
    %c0_24 = arith.constant 0 : index
    %c0_25 = arith.constant 0 : index
    %27 = vector.load %arg11[%c0_24, %c0_25] : memref<128x128xf32, #tpu.memory_space<vmem>>, vector<128x128xf32>
    %c0_26 = arith.constant 0 : index
    %c0_27 = arith.constant 0 : index
    %28 = vector.load %arg10[%c0_26, %c0_27] : memref<32x128xf32, #tpu.memory_space<vmem>>, vector<32x128xf32>
    %cst_28 = arith.constant dense<0.000000e+00> : vector<16x128xf32>
    %29 = tpu.matmul %3, %28, %cst_28 {dimension_numbers = #tpu.dot_dimension_numbers<[1], [0], [0], [1], [0, 0, 1, 1], [], []>} : vector<16x32xf32>, vector<32x128xf32>, vector<16x128xf32> -> vector<16x128xf32>
    %c0_29 = arith.constant 0 : index
    %c0_30 = arith.constant 0 : index
    %30 = vector.load %arg12[%c0_29, %c0_30] : memref<1x128xf32, #tpu.memory_space<vmem>>, vector<1x128xf32>
    %31 = vector.broadcast %30 : vector<1x128xf32> to vector<16x128xf32>
    %32 = arith.addf %29, %31 : vector<16x128xf32>
    %33 = vector.extract_strided_slice %21 {offsets = [0, 0, 0], sizes = [2, 8, 32], strides = [1, 1, 1]} : vector<2x8x128xf32> to vector<2x8x32xf32>
    %34 = vector.extract_strided_slice %22 {offsets = [0, 0, 0], sizes = [2, 8, 32], strides = [1, 1, 1]} : vector<2x8x128xf32> to vector<2x8x32xf32>
    %35 = vector.extract_strided_slice %23 {offsets = [0, 0, 0], sizes = [2, 8, 32], strides = [1, 1, 1]} : vector<2x8x128xf32> to vector<2x8x32xf32>
    "tpu.trace_start"() <{level = 10 : i32, message = "btd,bsd->bts"}> : () -> ()
    %cst_31 = arith.constant dense<0.000000e+00> : vector<2x8x8xf32>
    %36 = tpu.matmul %33, %34, %cst_31 {dimension_numbers = #tpu.dot_dimension_numbers<[2], [2], [1], [1], [0, 0, 0, 1, 1, 1], [0], [0]>} : vector<2x8x32xf32>, vector<2x8x32xf32>, vector<2x8x8xf32> -> vector<2x8x8xf32>
    %cst_32 = arith.constant -1.000000e+30 : f32
    "tpu.trace_stop"() : () -> ()
    %37 = vector.shape_cast %26 : vector<2x1x8xi1> to vector<2x1x8xi1>
    %38 = vector.broadcast %37 : vector<2x1x8xi1> to vector<2x8x8xi1>
    %39 = vector.broadcast %cst_32 : f32 to vector<2x8x8xf32>
    %40 = arith.select %38, %36, %39 : vector<2x8x8xi1>, vector<2x8x8xf32>
    %cst_33 = arith.constant dense<0xFF800000> : vector<2x8xf32>
    %41 = vector.multi_reduction <maximumf>, %40, %cst_33 [2] : vector<2x8x8xf32> to vector<2x8xf32>
    %42 = vector.shape_cast %41 : vector<2x8xf32> to vector<2x8x1xf32>
    %43 = vector.broadcast %42 : vector<2x8x1xf32> to vector<2x8x8xf32>
    %44 = arith.subf %40, %43 : vector<2x8x8xf32>
    %45 = math.exp %44 : vector<2x8x8xf32>
    %cst_34 = arith.constant dense<0.000000e+00> : vector<2x8xf32>
    %46 = vector.multi_reduction <add>, %45, %cst_34 [2] : vector<2x8x8xf32> to vector<2x8xf32>
    %47 = vector.shape_cast %46 : vector<2x8xf32> to vector<2x8x1xf32>
    %48 = tpu.reciprocal %47 {approx = true} : vector<2x8x1xf32> -> vector<2x8x1xf32>
    %49 = vector.broadcast %48 : vector<2x8x1xf32> to vector<2x8x8xf32>
    %50 = arith.mulf %45, %49 : vector<2x8x8xf32>
    "tpu.trace_start"() <{level = 10 : i32, message = "bts,bsd->btd"}> : () -> ()
    %cst_35 = arith.constant dense<0.000000e+00> : vector<2x8x32xf32>
    %51 = tpu.matmul %50, %35, %cst_35 {dimension_numbers = #tpu.dot_dimension_numbers<[2], [1], [1], [2], [0, 0, 0, 1, 1, 2], [0], [0]>} : vector<2x8x8xf32>, vector<2x8x32xf32>, vector<2x8x32xf32> -> vector<2x8x32xf32>
    "tpu.trace_stop"() : () -> ()
    %52 = vector.extract_strided_slice %27 {offsets = [0, 0], sizes = [32, 128], strides = [1, 1]} : vector<128x128xf32> to vector<32x128xf32>
    %53 = vector.shape_cast %51 : vector<2x8x32xf32> to vector<16x32xf32>
    %cst_36 = arith.constant dense<0.000000e+00> : vector<16x128xf32>
    %54 = tpu.matmul %53, %52, %cst_36 {dimension_numbers = #tpu.dot_dimension_numbers<[1], [0], [0], [1], [0, 0, 1, 1], [], []>} : vector<16x32xf32>, vector<32x128xf32>, vector<16x128xf32> -> vector<16x128xf32>
    %55 = arith.addf %32, %54 : vector<16x128xf32>
    %56 = vector.extract_strided_slice %21 {offsets = [0, 0, 32], sizes = [2, 8, 32], strides = [1, 1, 1]} : vector<2x8x128xf32> to vector<2x8x32xf32>
    %57 = vector.extract_strided_slice %22 {offsets = [0, 0, 32], sizes = [2, 8, 32], strides = [1, 1, 1]} : vector<2x8x128xf32> to vector<2x8x32xf32>
    %58 = vector.extract_strided_slice %23 {offsets = [0, 0, 32], sizes = [2, 8, 32], strides = [1, 1, 1]} : vector<2x8x128xf32> to vector<2x8x32xf32>
    "tpu.trace_start"() <{level = 10 : i32, message = "btd,bsd->bts"}> : () -> ()
    %cst_37 = arith.constant dense<0.000000e+00> : vector<2x8x8xf32>
    %59 = tpu.matmul %56, %57, %cst_37 {dimension_numbers = #tpu.dot_dimension_numbers<[2], [2], [1], [1], [0, 0, 0, 1, 1, 1], [0], [0]>} : vector<2x8x32xf32>, vector<2x8x32xf32>, vector<2x8x8xf32> -> vector<2x8x8xf32>
    %cst_38 = arith.constant -1.000000e+30 : f32
    "tpu.trace_stop"() : () -> ()
    %60 = vector.shape_cast %26 : vector<2x1x8xi1> to vector<2x1x8xi1>
    %61 = vector.broadcast %60 : vector<2x1x8xi1> to vector<2x8x8xi1>
    %62 = vector.broadcast %cst_38 : f32 to vector<2x8x8xf32>
    %63 = arith.select %61, %59, %62 : vector<2x8x8xi1>, vector<2x8x8xf32>
    %cst_39 = arith.constant dense<0xFF800000> : vector<2x8xf32>
    %64 = vector.multi_reduction <maximumf>, %63, %cst_39 [2] : vector<2x8x8xf32> to vector<2x8xf32>
    %65 = vector.shape_cast %64 : vector<2x8xf32> to vector<2x8x1xf32>
    %66 = vector.broadcast %65 : vector<2x8x1xf32> to vector<2x8x8xf32>
    %67 = arith.subf %63, %66 : vector<2x8x8xf32>
    %68 = math.exp %67 : vector<2x8x8xf32>
    %cst_40 = arith.constant dense<0.000000e+00> : vector<2x8xf32>
    %69 = vector.multi_reduction <add>, %68, %cst_40 [2] : vector<2x8x8xf32> to vector<2x8xf32>
    %70 = vector.shape_cast %69 : vector<2x8xf32> to vector<2x8x1xf32>
    %71 = tpu.reciprocal %70 {approx = true} : vector<2x8x1xf32> -> vector<2x8x1xf32>
    %72 = vector.broadcast %71 : vector<2x8x1xf32> to vector<2x8x8xf32>
    %73 = arith.mulf %68, %72 : vector<2x8x8xf32>
    "tpu.trace_start"() <{level = 10 : i32, message = "bts,bsd->btd"}> : () -> ()
    %cst_41 = arith.constant dense<0.000000e+00> : vector<2x8x32xf32>
    %74 = tpu.matmul %73, %58, %cst_41 {dimension_numbers = #tpu.dot_dimension_numbers<[2], [1], [1], [2], [0, 0, 0, 1, 1, 2], [0], [0]>} : vector<2x8x8xf32>, vector<2x8x32xf32>, vector<2x8x32xf32> -> vector<2x8x32xf32>
    "tpu.trace_stop"() : () -> ()
    %75 = vector.extract_strided_slice %27 {offsets = [32, 0], sizes = [32, 128], strides = [1, 1]} : vector<128x128xf32> to vector<32x128xf32>
    %76 = vector.shape_cast %74 : vector<2x8x32xf32> to vector<16x32xf32>
    %cst_42 = arith.constant dense<0.000000e+00> : vector<16x128xf32>
    %77 = tpu.matmul %76, %75, %cst_42 {dimension_numbers = #tpu.dot_dimension_numbers<[1], [0], [0], [1], [0, 0, 1, 1], [], []>} : vector<16x32xf32>, vector<32x128xf32>, vector<16x128xf32> -> vector<16x128xf32>
    %78 = arith.addf %55, %77 : vector<16x128xf32>
    %79 = vector.extract_strided_slice %21 {offsets = [0, 0, 64], sizes = [2, 8, 32], strides = [1, 1, 1]} : vector<2x8x128xf32> to vector<2x8x32xf32>
    %80 = vector.extract_strided_slice %22 {offsets = [0, 0, 64], sizes = [2, 8, 32], strides = [1, 1, 1]} : vector<2x8x128xf32> to vector<2x8x32xf32>
    %81 = vector.extract_strided_slice %23 {offsets = [0, 0, 64], sizes = [2, 8, 32], strides = [1, 1, 1]} : vector<2x8x128xf32> to vector<2x8x32xf32>
    "tpu.trace_start"() <{level = 10 : i32, message = "btd,bsd->bts"}> : () -> ()
    %cst_43 = arith.constant dense<0.000000e+00> : vector<2x8x8xf32>
    %82 = tpu.matmul %79, %80, %cst_43 {dimension_numbers = #tpu.dot_dimension_numbers<[2], [2], [1], [1], [0, 0, 0, 1, 1, 1], [0], [0]>} : vector<2x8x32xf32>, vector<2x8x32xf32>, vector<2x8x8xf32> -> vector<2x8x8xf32>
    %cst_44 = arith.constant -1.000000e+30 : f32
    "tpu.trace_stop"() : () -> ()
    %83 = vector.shape_cast %26 : vector<2x1x8xi1> to vector<2x1x8xi1>
    %84 = vector.broadcast %83 : vector<2x1x8xi1> to vector<2x8x8xi1>
    %85 = vector.broadcast %cst_44 : f32 to vector<2x8x8xf32>
    %86 = arith.select %84, %82, %85 : vector<2x8x8xi1>, vector<2x8x8xf32>
    %cst_45 = arith.constant dense<0xFF800000> : vector<2x8xf32>
    %87 = vector.multi_reduction <maximumf>, %86, %cst_45 [2] : vector<2x8x8xf32> to vector<2x8xf32>
    %88 = vector.shape_cast %87 : vector<2x8xf32> to vector<2x8x1xf32>
    %89 = vector.broadcast %88 : vector<2x8x1xf32> to vector<2x8x8xf32>
    %90 = arith.subf %86, %89 : vector<2x8x8xf32>
    %91 = math.exp %90 : vector<2x8x8xf32>
    %cst_46 = arith.constant dense<0.000000e+00> : vector<2x8xf32>
    %92 = vector.multi_reduction <add>, %91, %cst_46 [2] : vector<2x8x8xf32> to vector<2x8xf32>
    %93 = vector.shape_cast %92 : vector<2x8xf32> to vector<2x8x1xf32>
    %94 = tpu.reciprocal %93 {approx = true} : vector<2x8x1xf32> -> vector<2x8x1xf32>
    %95 = vector.broadcast %94 : vector<2x8x1xf32> to vector<2x8x8xf32>
    %96 = arith.mulf %91, %95 : vector<2x8x8xf32>
    "tpu.trace_start"() <{level = 10 : i32, message = "bts,bsd->btd"}> : () -> ()
    %cst_47 = arith.constant dense<0.000000e+00> : vector<2x8x32xf32>
    %97 = tpu.matmul %96, %81, %cst_47 {dimension_numbers = #tpu.dot_dimension_numbers<[2], [1], [1], [2], [0, 0, 0, 1, 1, 2], [0], [0]>} : vector<2x8x8xf32>, vector<2x8x32xf32>, vector<2x8x32xf32> -> vector<2x8x32xf32>
    "tpu.trace_stop"() : () -> ()
    %98 = vector.extract_strided_slice %27 {offsets = [64, 0], sizes = [32, 128], strides = [1, 1]} : vector<128x128xf32> to vector<32x128xf32>
    %99 = vector.shape_cast %97 : vector<2x8x32xf32> to vector<16x32xf32>
    %cst_48 = arith.constant dense<0.000000e+00> : vector<16x128xf32>
    %100 = tpu.matmul %99, %98, %cst_48 {dimension_numbers = #tpu.dot_dimension_numbers<[1], [0], [0], [1], [0, 0, 1, 1], [], []>} : vector<16x32xf32>, vector<32x128xf32>, vector<16x128xf32> -> vector<16x128xf32>
    %101 = arith.addf %78, %100 : vector<16x128xf32>
    %102 = vector.extract_strided_slice %21 {offsets = [0, 0, 96], sizes = [2, 8, 32], strides = [1, 1, 1]} : vector<2x8x128xf32> to vector<2x8x32xf32>
    %103 = vector.extract_strided_slice %22 {offsets = [0, 0, 96], sizes = [2, 8, 32], strides = [1, 1, 1]} : vector<2x8x128xf32> to vector<2x8x32xf32>
    %104 = vector.extract_strided_slice %23 {offsets = [0, 0, 96], sizes = [2, 8, 32], strides = [1, 1, 1]} : vector<2x8x128xf32> to vector<2x8x32xf32>
    "tpu.trace_start"() <{level = 10 : i32, message = "btd,bsd->bts"}> : () -> ()
    %cst_49 = arith.constant dense<0.000000e+00> : vector<2x8x8xf32>
    %105 = tpu.matmul %102, %103, %cst_49 {dimension_numbers = #tpu.dot_dimension_numbers<[2], [2], [1], [1], [0, 0, 0, 1, 1, 1], [0], [0]>} : vector<2x8x32xf32>, vector<2x8x32xf32>, vector<2x8x8xf32> -> vector<2x8x8xf32>
    %cst_50 = arith.constant -1.000000e+30 : f32
    "tpu.trace_stop"() : () -> ()
    %106 = vector.shape_cast %26 : vector<2x1x8xi1> to vector<2x1x8xi1>
    %107 = vector.broadcast %106 : vector<2x1x8xi1> to vector<2x8x8xi1>
    %108 = vector.broadcast %cst_50 : f32 to vector<2x8x8xf32>
    %109 = arith.select %107, %105, %108 : vector<2x8x8xi1>, vector<2x8x8xf32>
    %cst_51 = arith.constant dense<0xFF800000> : vector<2x8xf32>
    %110 = vector.multi_reduction <maximumf>, %109, %cst_51 [2] : vector<2x8x8xf32> to vector<2x8xf32>
    %111 = vector.shape_cast %110 : vector<2x8xf32> to vector<2x8x1xf32>
    %112 = vector.broadcast %111 : vector<2x8x1xf32> to vector<2x8x8xf32>
    %113 = arith.subf %109, %112 : vector<2x8x8xf32>
    %114 = math.exp %113 : vector<2x8x8xf32>
    %cst_52 = arith.constant dense<0.000000e+00> : vector<2x8xf32>
    %115 = vector.multi_reduction <add>, %114, %cst_52 [2] : vector<2x8x8xf32> to vector<2x8xf32>
    %116 = vector.shape_cast %115 : vector<2x8xf32> to vector<2x8x1xf32>
    %117 = tpu.reciprocal %116 {approx = true} : vector<2x8x1xf32> -> vector<2x8x1xf32>
    %118 = vector.broadcast %117 : vector<2x8x1xf32> to vector<2x8x8xf32>
    %119 = arith.mulf %114, %118 : vector<2x8x8xf32>
    "tpu.trace_start"() <{level = 10 : i32, message = "bts,bsd->btd"}> : () -> ()
    %cst_53 = arith.constant dense<0.000000e+00> : vector<2x8x32xf32>
    %120 = tpu.matmul %119, %104, %cst_53 {dimension_numbers = #tpu.dot_dimension_numbers<[2], [1], [1], [2], [0, 0, 0, 1, 1, 2], [0], [0]>} : vector<2x8x8xf32>, vector<2x8x32xf32>, vector<2x8x32xf32> -> vector<2x8x32xf32>
    "tpu.trace_stop"() : () -> ()
    %121 = vector.extract_strided_slice %27 {offsets = [96, 0], sizes = [32, 128], strides = [1, 1]} : vector<128x128xf32> to vector<32x128xf32>
    %122 = vector.shape_cast %120 : vector<2x8x32xf32> to vector<16x32xf32>
    %cst_54 = arith.constant dense<0.000000e+00> : vector<16x128xf32>
    %123 = tpu.matmul %122, %121, %cst_54 {dimension_numbers = #tpu.dot_dimension_numbers<[1], [0], [0], [1], [0, 0, 1, 1], [], []>} : vector<16x32xf32>, vector<32x128xf32>, vector<16x128xf32> -> vector<16x128xf32>
    %124 = arith.addf %101, %123 : vector<16x128xf32>
    %125 = vector.shape_cast %124 : vector<16x128xf32> to vector<2x8x128xf32>
    %c0_55 = arith.constant 0 : index
    %c0_56 = arith.constant 0 : index
    %c0_57 = arith.constant 0 : index
    %126 = vector.load %arg13[%c0_55, %c0_56, %c0_57] : memref<2x8x128xf32, #tpu.memory_space<vmem>>, vector<2x8x128xf32>
    tpu.vector_store %arg13[%c0_55, %c0_56, %c0_57], %125 {strides = array<i32>} : memref<2x8x128xf32, #tpu.memory_space<vmem>>, vector<2x8x128xf32>,
    return
  }
  func.func @transform_0(%arg0: i32) -> (i32, i32, i32) {
    %c0_i32 = arith.constant 0 : i32
    %c0_i32_0 = arith.constant 0 : i32
    %c0_i32_1 = arith.constant 0 : i32
    return %arg0, %c0_i32, %c0_i32_0 : i32, i32, i32
  }
  func.func @transform_1(%arg0: i32) -> (i32, i32, i32) {
    %c0_i32 = arith.constant 0 : i32
    %c0_i32_0 = arith.constant 0 : i32
    %c0_i32_1 = arith.constant 0 : i32
    return %arg0, %c0_i32, %c0_i32_0 : i32, i32, i32
  }
  func.func @transform_2(%arg0: i32) -> (i32, i32, i32) {
    %c0_i32 = arith.constant 0 : i32
    %c0_i32_0 = arith.constant 0 : i32
    %c0_i32_1 = arith.constant 0 : i32
    return %arg0, %c0_i32, %c0_i32_0 : i32, i32, i32
  }
  func.func @transform_3(%arg0: i32) -> (i32, i32, i32) {
    %c0_i32 = arith.constant 0 : i32
    %c0_i32_0 = arith.constant 0 : i32
    %c0_i32_1 = arith.constant 0 : i32
    return %arg0, %c0_i32, %c0_i32_0 : i32, i32, i32
  }
  func.func @transform_4(%arg0: i32) -> (i32, i32, i32) {
    %c0_i32 = arith.constant 0 : i32
    %c0_i32_0 = arith.constant 0 : i32
    %c0_i32_1 = arith.constant 0 : i32
    return %arg0, %c0_i32, %c0_i32_0 : i32, i32, i32
  }
  func.func @transform_5(%arg0: i32) -> (i32, i32) {
    %c0_i32 = arith.constant 0 : i32
    %c0_i32_0 = arith.constant 0 : i32
    %c0_i32_1 = arith.constant 0 : i32
    return %c0_i32, %c0_i32_0 : i32, i32
  }
  func.func @transform_6(%arg0: i32) -> (i32, i32) {
    %c0_i32 = arith.constant 0 : i32
    %c0_i32_0 = arith.constant 0 : i32
    %c0_i32_1 = arith.constant 0 : i32
    return %c0_i32, %c0_i32_0 : i32, i32
  }
  func.func @transform_7(%arg0: i32) -> (i32, i32) {
    %c0_i32 = arith.constant 0 : i32
    %c0_i32_0 = arith.constant 0 : i32
    %c0_i32_1 = arith.constant 0 : i32
    return %c0_i32, %c0_i32_0 : i32, i32
  }
  func.func @transform_8(%arg0: i32) -> (i32, i32) {
    %c0_i32 = arith.constant 0 : i32
    %c0_i32_0 = arith.constant 0 : i32
    %c0_i32_1 = arith.constant 0 : i32
    return %c0_i32, %c0_i32_0 : i32, i32
  }
  func.func @transform_9(%arg0: i32) -> (i32, i32) {
    %c0_i32 = arith.constant 0 : i32
    %c0_i32_0 = arith.constant 0 : i32
    %c0_i32_1 = arith.constant 0 : i32
    return %c0_i32, %c0_i32_0 : i32, i32
  }
  func.func @transform_10(%arg0: i32) -> (i32, i32) {
    %c0_i32 = arith.constant 0 : i32
    %c0_i32_0 = arith.constant 0 : i32
    %c0_i32_1 = arith.constant 0 : i32
    return %c0_i32, %c0_i32_0 : i32, i32
  }
  func.func @transform_11(%arg0: i32) -> (i32, i32) {
    %c0_i32 = arith.constant 0 : i32
    %c0_i32_0 = arith.constant 0 : i32
    %c0_i32_1 = arith.constant 0 : i32
    return %c0_i32, %c0_i32_0 : i32, i32
  }
  func.func @transform_12(%arg0: i32) -> (i32, i32, i32) {
    %c0_i32 = arith.constant 0 : i32
    %c0_i32_0 = arith.constant 0 : i32
    %c0_i32_1 = arith.constant 0 : i32
    return %arg0, %c0_i32, %c0_i32_0 : i32, i32, i32
  }
}

</mosaic_0001>

<llo_original>
// kernel: one_side_inter_modality_update.1
$region0: #{one_side_inter_modality_update.1}
  #allocation0 [shape = 'u32[]', space=smem, size = 0x4, offset = 0x4, fixed_abs, tag = 'smem constant byte address 0x4 - core index']
  #allocation1 [shape = 'u32[72,128]{1,0:T(1,128)}', space=vmem, size = 0x9000, scoped, tag = 'internal scratch']
  %s0 = inlined_call_operand.vmem [shape: f32[2,8,32], index: 0, kind: input, shape index: {}]
  %s1 = inlined_call_operand.vmem [shape: f32[2,8,32], index: 1, kind: input, shape index: {}]
  %s2 = inlined_call_operand.vmem [shape: f32[2,8,1], index: 2, kind: input, shape index: {}]
  %s3 = inlined_call_operand.vmem [shape: f32[2,1,8], index: 3, kind: input, shape index: {}]
  %s4 = inlined_call_operand.vmem [shape: f32[2,8,1], index: 4, kind: input, shape index: {}]
  %s5 = inlined_call_operand.vmem [shape: f32[32,256], index: 5, kind: input, shape index: {}]
  %s6 = inlined_call_operand.vmem [shape: f32[1,256], index: 6, kind: input, shape index: {}]
  %s7 = inlined_call_operand.vmem [shape: f32[32,128], index: 7, kind: input, shape index: {}]
  %s8 = inlined_call_operand.vmem [shape: f32[1,128], index: 8, kind: input, shape index: {}]
  %s9 = inlined_call_operand.vmem [shape: f32[32,128], index: 9, kind: input, shape index: {}]
  %s10 = inlined_call_operand.vmem [shape: f32[128,128], index: 10, kind: input, shape index: {}]
  %s11 = inlined_call_operand.vmem [shape: f32[1,128], index: 11, kind: input, shape index: {}]
  %s12 = inlined_call_operand.hbm [shape: f32[2,8,128], index: 12, kind: output, shape index: {}]
  %s13 = sld [smem:[#allocation0]]
  $region58: #{one_side_inter_modality_update.1} parent=0
    _
  %s15 = ssub.s32 1, %s13
  %s16 = scalar_select 0, %s15, %s13
  $region1: #{one_side_inter_modality_update.1} parent=0
    #allocation2 [shape = 'u8[8192]{0}', space=vmem, size = 0x2000, scoped, tag = 'output window, operand 0, single buffered']
    #allocation3 [shape = 's32[1]{0}', space=sflag, size = 0x4, scoped, tag = 'scoped memory for one_side_inter_modality_update.1']
    %17 = vsyncpa [#allocation3], 0
    // Predicated region
    $region2: #{one_side_inter_modality_update.1} parent=1 // pred_check
      _
    $region3: #{one_side_inter_modality_update.1} parent=1 // pred_check_branch
      %19 = sbr.rel (0) target = $region5
    $region4: #{one_side_inter_modality_update.1} parent=1 // pred_region
      _
    $region5: #{one_side_inter_modality_update.1} parent=1 // pred_fallthru
      _
    // Predicated region
    $region6: #{one_side_inter_modality_update.1} parent=1 // pred_check
      _
    $region7: #{one_side_inter_modality_update.1} parent=1 // pred_check_branch
      %21 = sbr.rel (0) target = $region9
    $region8: #{one_side_inter_modality_update.1} parent=1 // pred_region
      _
    $region9: #{one_side_inter_modality_update.1} parent=1 // pred_fallthru
      _
    // Predicated region
    $region10: #{one_side_inter_modality_update.1} parent=1 // pred_check
      _
    $region11: #{one_side_inter_modality_update.1} parent=1 // pred_check_branch
      %23 = sbr.rel (0) target = $region13
    $region12: #{one_side_inter_modality_update.1} parent=1 // pred_region
      _
    $region13: #{one_side_inter_modality_update.1} parent=1 // pred_fallthru
      _
    // Predicated region
    $region14: #{one_side_inter_modality_update.1} parent=1 // pred_check
      _
    $region15: #{one_side_inter_modality_update.1} parent=1 // pred_check_branch
      %25 = sbr.rel (0) target = $region17
    $region16: #{one_side_inter_modality_update.1} parent=1 // pred_region
      _
    $region17: #{one_side_inter_modality_update.1} parent=1 // pred_fallthru
      _
    // Predicated region
    $region18: #{one_side_inter_modality_update.1} parent=1 // pred_check
      _
    $region19: #{one_side_inter_modality_update.1} parent=1 // pred_check_branch
      %27 = sbr.rel (0) target = $region21
    $region20: #{one_side_inter_modality_update.1} parent=1 // pred_region
      _
    $region21: #{one_side_inter_modality_update.1} parent=1 // pred_fallthru
      _
    // Predicated region
    $region22: #{one_side_inter_modality_update.1} parent=1 // pred_check
      _
    $region23: #{one_side_inter_modality_update.1} parent=1 // pred_check_branch
      %29 = sbr.rel (0) target = $region25
    $region24: #{one_side_inter_modality_update.1} parent=1 // pred_region
      _
    $region25: #{one_side_inter_modality_update.1} parent=1 // pred_fallthru
      _
    // Predicated region
    $region26: #{one_side_inter_modality_update.1} parent=1 // pred_check
      _
    $region27: #{one_side_inter_modality_update.1} parent=1 // pred_check_branch
      %31 = sbr.rel (0) target = $region29
    $region28: #{one_side_inter_modality_update.1} parent=1 // pred_region
      _
    $region29: #{one_side_inter_modality_update.1} parent=1 // pred_fallthru
      _
    // Predicated region
    $region30: #{one_side_inter_modality_update.1} parent=1 // pred_check
      _
    $region31: #{one_side_inter_modality_update.1} parent=1 // pred_check_branch
      %33 = sbr.rel (0) target = $region33
    $region32: #{one_side_inter_modality_update.1} parent=1 // pred_region
      _
    $region33: #{one_side_inter_modality_update.1} parent=1 // pred_fallthru
      _
    // Predicated region
    $region34: #{one_side_inter_modality_update.1} parent=1 // pred_check
      _
    $region35: #{one_side_inter_modality_update.1} parent=1 // pred_check_branch
      %35 = sbr.rel (0) target = $region37
    $region36: #{one_side_inter_modality_update.1} parent=1 // pred_region
      _
    $region37: #{one_side_inter_modality_update.1} parent=1 // pred_fallthru
      _
    // Predicated region
    $region38: #{one_side_inter_modality_update.1} parent=1 // pred_check
      _
    $region39: #{one_side_inter_modality_update.1} parent=1 // pred_check_branch
      %37 = sbr.rel (0) target = $region41
    $region40: #{one_side_inter_modality_update.1} parent=1 // pred_region
      _
    $region41: #{one_side_inter_modality_update.1} parent=1 // pred_fallthru
      _
    // Predicated region
    $region42: #{one_side_inter_modality_update.1} parent=1 // pred_check
      _
    $region43: #{one_side_inter_modality_update.1} parent=1 // pred_check_branch
      %39 = sbr.rel (0) target = $region45
    $region44: #{one_side_inter_modality_update.1} parent=1 // pred_region
      _
    $region45: #{one_side_inter_modality_update.1} parent=1 // pred_fallthru
      _
    // Predicated region
    $region46: #{one_side_inter_modality_update.1} parent=1 // pred_check
      _
    $region47: #{one_side_inter_modality_update.1} parent=1 // pred_check_branch
      %41 = sbr.rel (0) target = $region49
    $region48: #{one_side_inter_modality_update.1} parent=1 // pred_region
      _
    $region49: #{one_side_inter_modality_update.1} parent=1 // pred_fallthru
      _
    %v42 = vld [vmem:[%s0] sm:$0xff]
    %v43 = vld [vmem:[%s0 + $0x8] sm:$0xff]
    %v44 = vld [vmem:[%s1] sm:$0xff]
    %v45 = vld [vmem:[%s1 + $0x8] sm:$0xff]
    %v46 = vld [vmem:[%s5] sm:$0xff]
    %v47 = vld [vmem:[%s5 + $0x8] sm:$0xff]
    %v48 = vld [vmem:[%s5 + $0x10] sm:$0xff]
    %v49 = vld [vmem:[%s5 + $0x18] sm:$0xff]
    %v50 = vld [vmem:[%s5 + $0x20] sm:$0xff]
    %v51 = vld [vmem:[%s5 + $0x28] sm:$0xff]
    %v52 = vld [vmem:[%s5 + $0x30] sm:$0xff]
    %v53 = vld [vmem:[%s5 + $0x38] sm:$0xff]
    %v54 = vld [vmem:[%s6] sm:$0x3]
    %v56 = vperm.slane %v54, 0
    %v57 = vperm.slane %v54, 1
    %vm60 = vcmask 261120
    %v62 = vsel %vm60, %v42, 0
    %v65 = vsel %vm60, %v43, 0
    %67 = vmatpush.msra.mxu0 0.0
    %68 = vmatpush.msra.mxu0 0.0
    %69 = vmatpush.msra.mxu0 0.0
    %70 = vmatpush.msra.mxu0 0.0
    %71 = vmatpush.msra.mxu0 0.0
    %72 = vmatpush.msra.mxu0 0.0
    %73 = vmatpush.msra.mxu0 0.0
    %74 = vmatpush.msra.mxu0 0.0
    %75 = vmatpush.msra.mxu0 0.0
    %76 = vmatpush.msra.mxu0 0.0
    %77 = vmatpush.msra.mxu0 0.0
    %78 = vmatpush.msra.mxu0 0.0
    %79 = vmatpush.msra.mxu0 %v52
    %80 = vmatpush.msra.mxu0 %v50
    %81 = vmatpush.msra.mxu0 %v48
    %82 = vmatpush.msra.mxu0 %v46
    %83 = vmatmul.f32.gmra.mxu0 %v62
    %v84 = vpop.f32.mrf.mxu0
    %v85 = vadd.f32 %v56, %v84
    %86 = vmatmul.f32.gmra.mxu0 %v65
    %v87 = vpop.f32.mrf.mxu0
    %v88 = vadd.f32 %v56, %v87
    %89 = vdwg.mxu0
    %90 = vmatpush.msra.mxu0 0.0
    %91 = vmatpush.msra.mxu0 0.0
    %92 = vmatpush.msra.mxu0 0.0
    %93 = vmatpush.msra.mxu0 0.0
    %94 = vmatpush.msra.mxu0 0.0
    %95 = vmatpush.msra.mxu0 0.0
    %96 = vmatpush.msra.mxu0 0.0
    %97 = vmatpush.msra.mxu0 0.0
    %98 = vmatpush.msra.mxu0 0.0
    %99 = vmatpush.msra.mxu0 0.0
    %100 = vmatpush.msra.mxu0 0.0
    %101 = vmatpush.msra.mxu0 0.0
    %102 = vmatpush.msra.mxu0 %v53
    %103 = vmatpush.msra.mxu0 %v51
    %104 = vmatpush.msra.mxu0 %v49
    %105 = vmatpush.msra.mxu0 %v47
    %106 = vmatmul.f32.gmra.mxu0 %v62
    %v107 = vpop.f32.mrf.mxu0
    %v108 = vadd.f32 %v57, %v107
    %109 = vmatmul.f32.gmra.mxu0 %v65
    %v110 = vpop.f32.mrf.mxu0
    %v111 = vadd.f32 %v57, %v110
    %112 = vdwg.mxu0
    %v113 = vld [vmem:[%s7] sm:$0xff]
    %v114 = vld [vmem:[%s7 + $0x8] sm:$0xff]
    %v115 = vld [vmem:[%s7 + $0x10] sm:$0xff]
    %v116 = vld [vmem:[%s7 + $0x18] sm:$0xff]
    %v117 = vld [vmem:[%s8] sm:$0x1]
    %v119 = vperm.slane %v117, 0
    %v122 = vsel %vm60, %v44, 0
    %v125 = vsel %vm60, %v45, 0
    %127 = vmatpush.msra.mxu0 0.0
    %128 = vmatpush.msra.mxu0 0.0
    %129 = vmatpush.msra.mxu0 0.0
    %130 = vmatpush.msra.mxu0 0.0
    %131 = vmatpush.msra.mxu0 0.0
    %132 = vmatpush.msra.mxu0 0.0
    %133 = vmatpush.msra.mxu0 0.0
    %134 = vmatpush.msra.mxu0 0.0
    %135 = vmatpush.msra.mxu0 0.0
    %136 = vmatpush.msra.mxu0 0.0
    %137 = vmatpush.msra.mxu0 0.0
    %138 = vmatpush.msra.mxu0 0.0
    %139 = vmatpush.msra.mxu0 %v116
    %140 = vmatpush.msra.mxu0 %v115
    %141 = vmatpush.msra.mxu0 %v114
    %142 = vmatpush.msra.mxu0 %v113
    %143 = vmatmul.f32.gmra.mxu0 %v122
    %v144 = vpop.f32.mrf.mxu0
    %v145 = vadd.f32 %v119, %v144
    %146 = vmatmul.f32.gmra.mxu0 %v125
    %v147 = vpop.f32.mrf.mxu0
    %v148 = vadd.f32 %v119, %v147
    %149 = vdwg.mxu0
    %v150 = vld [vmem:[%s2] sm:$0xff]
    %v151 = vld [vmem:[%s2 + $0x8] sm:$0xff]
    %153 = vset.pattern.permute.xlu0 0
    %154 = vperm.xlu0 %153, %v150
    %v155 = vpop.permute.xlu0 %154
    %158 = vset.pattern.permute.xlu0 0
    %159 = vperm.xlu0 %158, %v151
    %v160 = vpop.permute.xlu0 %159
    %v162 = vmul.f32 %v85, %v155
    %v163 = vmul.f32 %v108, %v155
    %v164 = vmul.f32 %v88, %v160
    %v165 = vmul.f32 %v111, %v160
    %v166 = vld [vmem:[%s4] sm:$0xff]
    %v167 = vld [vmem:[%s4 + $0x8] sm:$0xff]
    %169 = vset.pattern.permute.xlu0 0
    %170 = vperm.xlu0 %169, %v166
    %v171 = vpop.permute.xlu0 %170
    %174 = vset.pattern.permute.xlu0 0
    %175 = vperm.xlu0 %174, %v167
    %v176 = vpop.permute.xlu0 %175
    %v178 = vmul.f32 %v145, %v171
    %v179 = vmul.f32 %v148, %v176
    %v180 = vld [vmem:[%s3] sm:$0x1]
    %v181 = vld [vmem:[%s3 + $0x1] sm:$0x1]
    %vm182 = vcmp.gt.f32.partialorder %v180, 0.0
    %vm183 = vcmp.gt.f32.partialorder %v181, 0.0
    %v184 = vld [vmem:[%s10] sm:$0xff]
    %v185 = vld [vmem:[%s10 + $0x8] sm:$0xff]
    %v186 = vld [vmem:[%s10 + $0x10] sm:$0xff]
    %v187 = vld [vmem:[%s10 + $0x18] sm:$0xff]
    %v188 = vld [vmem:[%s10 + $0x20] sm:$0xff]
    %v189 = vld [vmem:[%s10 + $0x28] sm:$0xff]
    %v190 = vld [vmem:[%s10 + $0x30] sm:$0xff]
    %v191 = vld [vmem:[%s10 + $0x38] sm:$0xff]
    %v192 = vld [vmem:[%s10 + $0x40] sm:$0xff]
    %v193 = vld [vmem:[%s10 + $0x48] sm:$0xff]
    %v194 = vld [vmem:[%s10 + $0x50] sm:$0xff]
    %v195 = vld [vmem:[%s10 + $0x58] sm:$0xff]
    %v196 = vld [vmem:[%s10 + $0x60] sm:$0xff]
    %v197 = vld [vmem:[%s10 + $0x68] sm:$0xff]
    %v198 = vld [vmem:[%s10 + $0x70] sm:$0xff]
    %v199 = vld [vmem:[%s10 + $0x78] sm:$0xff]
    %v200 = vld [vmem:[%s9] sm:$0xff]
    %v201 = vld [vmem:[%s9 + $0x8] sm:$0xff]
    %v202 = vld [vmem:[%s9 + $0x10] sm:$0xff]
    %v203 = vld [vmem:[%s9 + $0x18] sm:$0xff]
    %v204 = vld [vmem:[%s11] sm:$0x1]
    %v206 = vperm.slane %v204, 0
    %208 = vmatpush.msra.mxu0 0.0
    %209 = vmatpush.msra.mxu0 0.0
    %210 = vmatpush.msra.mxu0 0.0
    %211 = vmatpush.msra.mxu0 0.0
    %212 = vmatpush.msra.mxu0 0.0
    %213 = vmatpush.msra.mxu0 0.0
    %214 = vmatpush.msra.mxu0 0.0
    %215 = vmatpush.msra.mxu0 0.0
    %216 = vmatpush.msra.mxu0 0.0
    %217 = vmatpush.msra.mxu0 0.0
    %218 = vmatpush.msra.mxu0 0.0
    %219 = vmatpush.msra.mxu0 0.0
    %220 = vmatpush.msra.mxu0 %v203
    %221 = vmatpush.msra.mxu0 %v202
    %222 = vmatpush.msra.mxu0 %v201
    %223 = vmatpush.msra.mxu0 %v200
    %224 = vmatmul.f32.gmra.mxu0 %v122
    %v225 = vpop.f32.mrf.mxu0
    %v226 = vadd.f32 %v206, %v225
    %227 = vmatmul.f32.gmra.mxu0 %v125
    %v228 = vpop.f32.mrf.mxu0
    %v229 = vadd.f32 %v206, %v228
    %230 = vdwg.mxu0
    %v232 = vsel %vm60, %v178, 0
    %v235 = vsel %vm60, %v162, 0
    %237 = vmatpush.xpose.msra.mxu0 0.0
    %238 = vmatpush.xpose.msra.mxu0 0.0
    %239 = vmatpush.xpose.msra.mxu0 0.0
    %240 = vmatpush.xpose.msra.mxu0 0.0
    %241 = vmatpush.xpose.msra.mxu0 0.0
    %242 = vmatpush.xpose.msra.mxu0 0.0
    %243 = vmatpush.xpose.msra.mxu0 0.0
    %244 = vmatpush.xpose.msra.mxu0 0.0
    %245 = vmatpush.xpose.msra.mxu0 0.0
    %246 = vmatpush.xpose.msra.mxu0 0.0
    %247 = vmatpush.xpose.msra.mxu0 0.0
    %248 = vmatpush.xpose.msra.mxu0 0.0
    %249 = vmatpush.xpose.msra.mxu0 0.0
    %250 = vmatpush.xpose.msra.mxu0 0.0
    %251 = vmatpush.xpose.msra.mxu0 0.0
    %252 = vmatpush.xpose.msra.mxu0 %v235
    %253 = vmatmul.f32.gmra.mxu0 %v232
    %v254 = vpop.f32.mrf.mxu0
    %v255 = vadd.f32 0.0, %v254
    %256 = vdwg.mxu0
    %v258 = vsel %vm60, %v179, 0
    %v261 = vsel %vm60, %v164, 0
    %263 = vmatpush.xpose.msra.mxu0 0.0
    %264 = vmatpush.xpose.msra.mxu0 0.0
    %265 = vmatpush.xpose.msra.mxu0 0.0
    %266 = vmatpush.xpose.msra.mxu0 0.0
    %267 = vmatpush.xpose.msra.mxu0 0.0
    %268 = vmatpush.xpose.msra.mxu0 0.0
    %269 = vmatpush.xpose.msra.mxu0 0.0
    %270 = vmatpush.xpose.msra.mxu0 0.0
    %271 = vmatpush.xpose.msra.mxu0 0.0
    %272 = vmatpush.xpose.msra.mxu0 0.0
    %273 = vmatpush.xpose.msra.mxu0 0.0
    %274 = vmatpush.xpose.msra.mxu0 0.0
    %275 = vmatpush.xpose.msra.mxu0 0.0
    %276 = vmatpush.xpose.msra.mxu0 0.0
    %277 = vmatpush.xpose.msra.mxu0 0.0
    %278 = vmatpush.xpose.msra.mxu0 %v261
    %279 = vmatmul.f32.gmra.mxu0 %v258
    %v280 = vpop.f32.mrf.mxu0
    %v281 = vadd.f32 0.0, %v280
    %282 = vdwg.mxu0
    %v283 = vsel %vm182, 1, 0
    %v284 = vsel %vm183, 1, 0
    %v285 = vperm.slane %v283, 0
    %v286 = vperm.slane %v284, 0
    %vm287 = vcmp.eq.s32.totalorder %v285, 1
    %vm288 = vcmp.eq.s32.totalorder %v286, 1
    %v289 = vsel %vm287, %v255, -1e+30
    %v290 = vsel %vm288, %v281, -1e+30
    %vm291 = vcmask 64512
    %v292 = vsel %vm291, %v289, -inf
    %293 = vmax.xlane.f32.xlu0 %v292
    %v294 = vpop.xlane.xlu0 %293
    %v295 = vsel %vm291, %v290, -inf
    %296 = vmax.xlane.f32.xlu0 %v295
    %v297 = vpop.xlane.xlu0 %296
    %v298 = vsub.f32 %v289, %v294
    %v299 = vsub.f32 %v290, %v297
    %v300 = vmul.f32 %v298, 1.442695
    %v301 = vpow.pop %v300
    %v302 = vmul.f32 %v299, 1.442695
    %v303 = vpow.pop %v302
    %v304 = vsel %vm291, %v301, 0.0
    %305 = vadd.xlane.f32.xlu0 %v304
    %v306 = vpop.xlane.xlu0 %305
    %v307 = vsel %vm291, %v303, 0.0
    %308 = vadd.xlane.f32.xlu0 %v307
    %v309 = vpop.xlane.xlu0 %308
    %v310 = vrcp.pop %v306
    %v311 = vrcp.pop %v309
    %v312 = vmul.f32 %v301, %v310
    %v313 = vmul.f32 %v303, %v311
    %v315 = vsel %vm291, %v312, 0
    %317 = vmatpush.msra.mxu0 0.0
    %318 = vmatpush.msra.mxu0 0.0
    %319 = vmatpush.msra.mxu0 0.0
    %320 = vmatpush.msra.mxu0 0.0
    %321 = vmatpush.msra.mxu0 0.0
    %322 = vmatpush.msra.mxu0 0.0
    %323 = vmatpush.msra.mxu0 0.0
    %324 = vmatpush.msra.mxu0 0.0
    %325 = vmatpush.msra.mxu0 0.0
    %326 = vmatpush.msra.mxu0 0.0
    %327 = vmatpush.msra.mxu0 0.0
    %328 = vmatpush.msra.mxu0 0.0
    %329 = vmatpush.msra.mxu0 0.0
    %330 = vmatpush.msra.mxu0 0.0
    %331 = vmatpush.msra.mxu0 0.0
    %332 = vmatpush.msra.mxu0 %v163
    %333 = vmatmul.f32.gmra.mxu0 %v315
    %v334 = vpop.f32.mrf.mxu0
    %v335 = vadd.f32 0.0, %v334
    %336 = vdwg.mxu0
    %v338 = vsel %vm291, %v313, 0
    %340 = vmatpush.msra.mxu0 0.0
    %341 = vmatpush.msra.mxu0 0.0
    %342 = vmatpush.msra.mxu0 0.0
    %343 = vmatpush.msra.mxu0 0.0
    %344 = vmatpush.msra.mxu0 0.0
    %345 = vmatpush.msra.mxu0 0.0
    %346 = vmatpush.msra.mxu0 0.0
    %347 = vmatpush.msra.mxu0 0.0
    %348 = vmatpush.msra.mxu0 0.0
    %349 = vmatpush.msra.mxu0 0.0
    %350 = vmatpush.msra.mxu0 0.0
    %351 = vmatpush.msra.mxu0 0.0
    %352 = vmatpush.msra.mxu0 0.0
    %353 = vmatpush.msra.mxu0 0.0
    %354 = vmatpush.msra.mxu0 0.0
    %355 = vmatpush.msra.mxu0 %v165
    %356 = vmatmul.f32.gmra.mxu0 %v338
    %v357 = vpop.f32.mrf.mxu0
    %v358 = vadd.f32 0.0, %v357
    %359 = vdwg.mxu0
    %v361 = vsel %vm60, %v335, 0
    %v364 = vsel %vm60, %v358, 0
    %366 = vmatpush.msra.mxu0 0.0
    %367 = vmatpush.msra.mxu0 0.0
    %368 = vmatpush.msra.mxu0 0.0
    %369 = vmatpush.msra.mxu0 0.0
    %370 = vmatpush.msra.mxu0 0.0
    %371 = vmatpush.msra.mxu0 0.0
    %372 = vmatpush.msra.mxu0 0.0
    %373 = vmatpush.msra.mxu0 0.0
    %374 = vmatpush.msra.mxu0 0.0
    %375 = vmatpush.msra.mxu0 0.0
    %376 = vmatpush.msra.mxu0 0.0
    %377 = vmatpush.msra.mxu0 0.0
    %378 = vmatpush.msra.mxu0 %v187
    %379 = vmatpush.msra.mxu0 %v186
    %380 = vmatpush.msra.mxu0 %v185
    %381 = vmatpush.msra.mxu0 %v184
    %382 = vmatmul.f32.gmra.mxu0 %v361
    %v383 = vpop.f32.mrf.mxu0
    %v384 = vadd.f32 0.0, %v383
    %385 = vmatmul.f32.gmra.mxu0 %v364
    %v386 = vpop.f32.mrf.mxu0
    %v387 = vadd.f32 0.0, %v386
    %388 = vdwg.mxu0
    %v389 = vadd.f32 %v226, %v384
    %v390 = vadd.f32 %v229, %v387
    %391 = vrot.lane.b32.xlu0 %v178, 96
    %v392 = vpop.permute.xlu0 %391
    %393 = vrot.lane.b32.xlu0 %v162, 96
    %v394 = vpop.permute.xlu0 %393
    %v395 = vsel %vm60, %v392, 0
    %v397 = vsel %vm60, %v394, 0
    %399 = vmatpush.xpose.msra.mxu0 0.0
    %400 = vmatpush.xpose.msra.mxu0 0.0
    %401 = vmatpush.xpose.msra.mxu0 0.0
    %402 = vmatpush.xpose.msra.mxu0 0.0
    %403 = vmatpush.xpose.msra.mxu0 0.0
    %404 = vmatpush.xpose.msra.mxu0 0.0
    %405 = vmatpush.xpose.msra.mxu0 0.0
    %406 = vmatpush.xpose.msra.mxu0 0.0
    %407 = vmatpush.xpose.msra.mxu0 0.0
    %408 = vmatpush.xpose.msra.mxu0 0.0
    %409 = vmatpush.xpose.msra.mxu0 0.0
    %410 = vmatpush.xpose.msra.mxu0 0.0
    %411 = vmatpush.xpose.msra.mxu0 0.0
    %412 = vmatpush.xpose.msra.mxu0 0.0
    %413 = vmatpush.xpose.msra.mxu0 0.0
    %414 = vmatpush.xpose.msra.mxu0 %v397
    %415 = vmatmul.f32.gmra.mxu0 %v395
    %v416 = vpop.f32.mrf.mxu0
    %v417 = vadd.f32 0.0, %v416
    %418 = vdwg.mxu0
    %419 = vrot.lane.b32.xlu0 %v179, 96
    %v420 = vpop.permute.xlu0 %419
    %421 = vrot.lane.b32.xlu0 %v164, 96
    %v422 = vpop.permute.xlu0 %421
    %v423 = vsel %vm60, %v420, 0
    %v425 = vsel %vm60, %v422, 0
    %427 = vmatpush.xpose.msra.mxu0 0.0
    %428 = vmatpush.xpose.msra.mxu0 0.0
    %429 = vmatpush.xpose.msra.mxu0 0.0
    %430 = vmatpush.xpose.msra.mxu0 0.0
    %431 = vmatpush.xpose.msra.mxu0 0.0
    %432 = vmatpush.xpose.msra.mxu0 0.0
    %433 = vmatpush.xpose.msra.mxu0 0.0
    %434 = vmatpush.xpose.msra.mxu0 0.0
    %435 = vmatpush.xpose.msra.mxu0 0.0
    %436 = vmatpush.xpose.msra.mxu0 0.0
    %437 = vmatpush.xpose.msra.mxu0 0.0
    %438 = vmatpush.xpose.msra.mxu0 0.0
    %439 = vmatpush.xpose.msra.mxu0 0.0
    %440 = vmatpush.xpose.msra.mxu0 0.0
    %441 = vmatpush.xpose.msra.mxu0 0.0
    %442 = vmatpush.xpose.msra.mxu0 %v425
    %443 = vmatmul.f32.gmra.mxu0 %v423
    %v444 = vpop.f32.mrf.mxu0
    %v445 = vadd.f32 0.0, %v444
    %446 = vdwg.mxu0
    %v447 = vsel %vm287, %v417, -1e+30
    %v448 = vsel %vm288, %v445, -1e+30
    %v449 = vsel %vm291, %v447, -inf
    %450 = vmax.xlane.f32.xlu0 %v449
    %v451 = vpop.xlane.xlu0 %450
    %v452 = vsel %vm291, %v448, -inf
    %453 = vmax.xlane.f32.xlu0 %v452
    %v454 = vpop.xlane.xlu0 %453
    %v455 = vsub.f32 %v447, %v451
    %v456 = vsub.f32 %v448, %v454
    %v457 = vmul.f32 %v455, 1.442695
    %v458 = vpow.pop %v457
    %v459 = vmul.f32 %v456, 1.442695
    %v460 = vpow.pop %v459
    %v461 = vsel %vm291, %v458, 0.0
    %462 = vadd.xlane.f32.xlu0 %v461
    %v463 = vpop.xlane.xlu0 %462
    %v464 = vsel %vm291, %v460, 0.0
    %465 = vadd.xlane.f32.xlu0 %v464
    %v466 = vpop.xlane.xlu0 %465
    %v467 = vrcp.pop %v463
    %v468 = vrcp.pop %v466
    %v469 = vmul.f32 %v458, %v467
    %v470 = vmul.f32 %v460, %v468
    %472 = vrot.lane.b32.xlu0 %v163, 96
    %v473 = vpop.permute.xlu0 %472
    %v476 = vsel %vm291, %v469, 0
    %478 = vmatpush.msra.mxu0 0.0
    %479 = vmatpush.msra.mxu0 0.0
    %480 = vmatpush.msra.mxu0 0.0
    %481 = vmatpush.msra.mxu0 0.0
    %482 = vmatpush.msra.mxu0 0.0
    %483 = vmatpush.msra.mxu0 0.0
    %484 = vmatpush.msra.mxu0 0.0
    %485 = vmatpush.msra.mxu0 0.0
    %486 = vmatpush.msra.mxu0 0.0
    %487 = vmatpush.msra.mxu0 0.0
    %488 = vmatpush.msra.mxu0 0.0
    %489 = vmatpush.msra.mxu0 0.0
    %490 = vmatpush.msra.mxu0 0.0
    %491 = vmatpush.msra.mxu0 0.0
    %492 = vmatpush.msra.mxu0 0.0
    %493 = vmatpush.msra.mxu0 %v473
    %494 = vmatmul.f32.gmra.mxu0 %v476
    %v495 = vpop.f32.mrf.mxu0
    %v496 = vadd.f32 0.0, %v495
    %497 = vdwg.mxu0
    %499 = vrot.lane.b32.xlu0 %v165, 96
    %v500 = vpop.permute.xlu0 %499
    %v503 = vsel %vm291, %v470, 0
    %505 = vmatpush.msra.mxu0 0.0
    %506 = vmatpush.msra.mxu0 0.0
    %507 = vmatpush.msra.mxu0 0.0
    %508 = vmatpush.msra.mxu0 0.0
    %509 = vmatpush.msra.mxu0 0.0
    %510 = vmatpush.msra.mxu0 0.0
    %511 = vmatpush.msra.mxu0 0.0
    %512 = vmatpush.msra.mxu0 0.0
    %513 = vmatpush.msra.mxu0 0.0
    %514 = vmatpush.msra.mxu0 0.0
    %515 = vmatpush.msra.mxu0 0.0
    %516 = vmatpush.msra.mxu0 0.0
    %517 = vmatpush.msra.mxu0 0.0
    %518 = vmatpush.msra.mxu0 0.0
    %519 = vmatpush.msra.mxu0 0.0
    %520 = vmatpush.msra.mxu0 %v500
    %521 = vmatmul.f32.gmra.mxu0 %v503
    %v522 = vpop.f32.mrf.mxu0
    %v523 = vadd.f32 0.0, %v522
    %524 = vdwg.mxu0
    %v526 = vsel %vm60, %v496, 0
    %v529 = vsel %vm60, %v523, 0
    %531 = vmatpush.msra.mxu0 0.0
    %532 = vmatpush.msra.mxu0 0.0
    %533 = vmatpush.msra.mxu0 0.0
    %534 = vmatpush.msra.mxu0 0.0
    %535 = vmatpush.msra.mxu0 0.0
    %536 = vmatpush.msra.mxu0 0.0
    %537 = vmatpush.msra.mxu0 0.0
    %538 = vmatpush.msra.mxu0 0.0
    %539 = vmatpush.msra.mxu0 0.0
    %540 = vmatpush.msra.mxu0 0.0
    %541 = vmatpush.msra.mxu0 0.0
    %542 = vmatpush.msra.mxu0 0.0
    %543 = vmatpush.msra.mxu0 %v191
    %544 = vmatpush.msra.mxu0 %v190
    %545 = vmatpush.msra.mxu0 %v189
    %546 = vmatpush.msra.mxu0 %v188
    %547 = vmatmul.f32.gmra.mxu0 %v526
    %v548 = vpop.f32.mrf.mxu0
    %v549 = vadd.f32 0.0, %v548
    %550 = vmatmul.f32.gmra.mxu0 %v529
    %v551 = vpop.f32.mrf.mxu0
    %v552 = vadd.f32 0.0, %v551
    %553 = vdwg.mxu0
    %v554 = vadd.f32 %v389, %v549
    %v555 = vadd.f32 %v390, %v552
    %556 = vrot.lane.b32.xlu0 %v178, 64
    %v557 = vpop.permute.xlu0 %556
    %558 = vrot.lane.b32.xlu0 %v162, 64
    %v559 = vpop.permute.xlu0 %558
    %v560 = vsel %vm60, %v557, 0
    %v562 = vsel %vm60, %v559, 0
    %564 = vmatpush.xpose.msra.mxu0 0.0
    %565 = vmatpush.xpose.msra.mxu0 0.0
    %566 = vmatpush.xpose.msra.mxu0 0.0
    %567 = vmatpush.xpose.msra.mxu0 0.0
    %568 = vmatpush.xpose.msra.mxu0 0.0
    %569 = vmatpush.xpose.msra.mxu0 0.0
    %570 = vmatpush.xpose.msra.mxu0 0.0
    %571 = vmatpush.xpose.msra.mxu0 0.0
    %572 = vmatpush.xpose.msra.mxu0 0.0
    %573 = vmatpush.xpose.msra.mxu0 0.0
    %574 = vmatpush.xpose.msra.mxu0 0.0
    %575 = vmatpush.xpose.msra.mxu0 0.0
    %576 = vmatpush.xpose.msra.mxu0 0.0
    %577 = vmatpush.xpose.msra.mxu0 0.0
    %578 = vmatpush.xpose.msra.mxu0 0.0
    %579 = vmatpush.xpose.msra.mxu0 %v562
    %580 = vmatmul.f32.gmra.mxu0 %v560
    %v581 = vpop.f32.mrf.mxu0
    %v582 = vadd.f32 0.0, %v581
    %583 = vdwg.mxu0
    %584 = vrot.lane.b32.xlu0 %v179, 64
    %v585 = vpop.permute.xlu0 %584
    %586 = vrot.lane.b32.xlu0 %v164, 64
    %v587 = vpop.permute.xlu0 %586
    %v588 = vsel %vm60, %v585, 0
    %v590 = vsel %vm60, %v587, 0
    %592 = vmatpush.xpose.msra.mxu0 0.0
    %593 = vmatpush.xpose.msra.mxu0 0.0
    %594 = vmatpush.xpose.msra.mxu0 0.0
    %595 = vmatpush.xpose.msra.mxu0 0.0
    %596 = vmatpush.xpose.msra.mxu0 0.0
    %597 = vmatpush.xpose.msra.mxu0 0.0
    %598 = vmatpush.xpose.msra.mxu0 0.0
    %599 = vmatpush.xpose.msra.mxu0 0.0
    %600 = vmatpush.xpose.msra.mxu0 0.0
    %601 = vmatpush.xpose.msra.mxu0 0.0
    %602 = vmatpush.xpose.msra.mxu0 0.0
    %603 = vmatpush.xpose.msra.mxu0 0.0
    %604 = vmatpush.xpose.msra.mxu0 0.0
    %605 = vmatpush.xpose.msra.mxu0 0.0
    %606 = vmatpush.xpose.msra.mxu0 0.0
    %607 = vmatpush.xpose.msra.mxu0 %v590
    %608 = vmatmul.f32.gmra.mxu0 %v588
    %v609 = vpop.f32.mrf.mxu0
    %v610 = vadd.f32 0.0, %v609
    %611 = vdwg.mxu0
    %v612 = vsel %vm287, %v582, -1e+30
    %v613 = vsel %vm288, %v610, -1e+30
    %v614 = vsel %vm291, %v612, -inf
    %615 = vmax.xlane.f32.xlu0 %v614
    %v616 = vpop.xlane.xlu0 %615
    %v617 = vsel %vm291, %v613, -inf
    %618 = vmax.xlane.f32.xlu0 %v617
    %v619 = vpop.xlane.xlu0 %618
    %v620 = vsub.f32 %v612, %v616
    %v621 = vsub.f32 %v613, %v619
    %v622 = vmul.f32 %v620, 1.442695
    %v623 = vpow.pop %v622
    %v624 = vmul.f32 %v621, 1.442695
    %v625 = vpow.pop %v624
    %v626 = vsel %vm291, %v623, 0.0
    %627 = vadd.xlane.f32.xlu0 %v626
    %v628 = vpop.xlane.xlu0 %627
    %v629 = vsel %vm291, %v625, 0.0
    %630 = vadd.xlane.f32.xlu0 %v629
    %v631 = vpop.xlane.xlu0 %630
    %v632 = vrcp.pop %v628
    %v633 = vrcp.pop %v631
    %v634 = vmul.f32 %v623, %v632
    %v635 = vmul.f32 %v625, %v633
    %636 = vrot.lane.b32.xlu0 %v163, 64
    %v637 = vpop.permute.xlu0 %636
    %v640 = vsel %vm291, %v634, 0
    %642 = vmatpush.msra.mxu0 0.0
    %643 = vmatpush.msra.mxu0 0.0
    %644 = vmatpush.msra.mxu0 0.0
    %645 = vmatpush.msra.mxu0 0.0
    %646 = vmatpush.msra.mxu0 0.0
    %647 = vmatpush.msra.mxu0 0.0
    %648 = vmatpush.msra.mxu0 0.0
    %649 = vmatpush.msra.mxu0 0.0
    %650 = vmatpush.msra.mxu0 0.0
    %651 = vmatpush.msra.mxu0 0.0
    %652 = vmatpush.msra.mxu0 0.0
    %653 = vmatpush.msra.mxu0 0.0
    %654 = vmatpush.msra.mxu0 0.0
    %655 = vmatpush.msra.mxu0 0.0
    %656 = vmatpush.msra.mxu0 0.0
    %657 = vmatpush.msra.mxu0 %v637
    %658 = vmatmul.f32.gmra.mxu0 %v640
    %v659 = vpop.f32.mrf.mxu0
    %v660 = vadd.f32 0.0, %v659
    %661 = vdwg.mxu0
    %662 = vrot.lane.b32.xlu0 %v165, 64
    %v663 = vpop.permute.xlu0 %662
    %v666 = vsel %vm291, %v635, 0
    %668 = vmatpush.msra.mxu0 0.0
    %669 = vmatpush.msra.mxu0 0.0
    %670 = vmatpush.msra.mxu0 0.0
    %671 = vmatpush.msra.mxu0 0.0
    %672 = vmatpush.msra.mxu0 0.0
    %673 = vmatpush.msra.mxu0 0.0
    %674 = vmatpush.msra.mxu0 0.0
    %675 = vmatpush.msra.mxu0 0.0
    %676 = vmatpush.msra.mxu0 0.0
    %677 = vmatpush.msra.mxu0 0.0
    %678 = vmatpush.msra.mxu0 0.0
    %679 = vmatpush.msra.mxu0 0.0
    %680 = vmatpush.msra.mxu0 0.0
    %681 = vmatpush.msra.mxu0 0.0
    %682 = vmatpush.msra.mxu0 0.0
    %683 = vmatpush.msra.mxu0 %v663
    %684 = vmatmul.f32.gmra.mxu0 %v666
    %v685 = vpop.f32.mrf.mxu0
    %v686 = vadd.f32 0.0, %v685
    %687 = vdwg.mxu0
    %v689 = vsel %vm60, %v660, 0
    %v692 = vsel %vm60, %v686, 0
    %694 = vmatpush.msra.mxu0 0.0
    %695 = vmatpush.msra.mxu0 0.0
    %696 = vmatpush.msra.mxu0 0.0
    %697 = vmatpush.msra.mxu0 0.0
    %698 = vmatpush.msra.mxu0 0.0
    %699 = vmatpush.msra.mxu0 0.0
    %700 = vmatpush.msra.mxu0 0.0
    %701 = vmatpush.msra.mxu0 0.0
    %702 = vmatpush.msra.mxu0 0.0
    %703 = vmatpush.msra.mxu0 0.0
    %704 = vmatpush.msra.mxu0 0.0
    %705 = vmatpush.msra.mxu0 0.0
    %706 = vmatpush.msra.mxu0 %v195
    %707 = vmatpush.msra.mxu0 %v194
    %708 = vmatpush.msra.mxu0 %v193
    %709 = vmatpush.msra.mxu0 %v192
    %710 = vmatmul.f32.gmra.mxu0 %v689
    %v711 = vpop.f32.mrf.mxu0
    %v712 = vadd.f32 0.0, %v711
    %713 = vmatmul.f32.gmra.mxu0 %v692
    %v714 = vpop.f32.mrf.mxu0
    %v715 = vadd.f32 0.0, %v714
    %716 = vdwg.mxu0
    %v717 = vadd.f32 %v554, %v712
    %v718 = vadd.f32 %v555, %v715
    %719 = vrot.lane.b32.xlu0 %v178, 32
    %v720 = vpop.permute.xlu0 %719
    %721 = vrot.lane.b32.xlu0 %v162, 32
    %v722 = vpop.permute.xlu0 %721
    %v723 = vsel %vm60, %v720, 0
    %v725 = vsel %vm60, %v722, 0
    %727 = vmatpush.xpose.msra.mxu0 0.0
    %728 = vmatpush.xpose.msra.mxu0 0.0
    %729 = vmatpush.xpose.msra.mxu0 0.0
    %730 = vmatpush.xpose.msra.mxu0 0.0
    %731 = vmatpush.xpose.msra.mxu0 0.0
    %732 = vmatpush.xpose.msra.mxu0 0.0
    %733 = vmatpush.xpose.msra.mxu0 0.0
    %734 = vmatpush.xpose.msra.mxu0 0.0
    %735 = vmatpush.xpose.msra.mxu0 0.0
    %736 = vmatpush.xpose.msra.mxu0 0.0
    %737 = vmatpush.xpose.msra.mxu0 0.0
    %738 = vmatpush.xpose.msra.mxu0 0.0
    %739 = vmatpush.xpose.msra.mxu0 0.0
    %740 = vmatpush.xpose.msra.mxu0 0.0
    %741 = vmatpush.xpose.msra.mxu0 0.0
    %742 = vmatpush.xpose.msra.mxu0 %v725
    %743 = vmatmul.f32.gmra.mxu0 %v723
    %v744 = vpop.f32.mrf.mxu0
    %v745 = vadd.f32 0.0, %v744
    %746 = vdwg.mxu0
    %747 = vrot.lane.b32.xlu0 %v179, 32
    %v748 = vpop.permute.xlu0 %747
    %749 = vrot.lane.b32.xlu0 %v164, 32
    %v750 = vpop.permute.xlu0 %749
    %v751 = vsel %vm60, %v748, 0
    %v753 = vsel %vm60, %v750, 0
    %755 = vmatpush.xpose.msra.mxu0 0.0
    %756 = vmatpush.xpose.msra.mxu0 0.0
    %757 = vmatpush.xpose.msra.mxu0 0.0
    %758 = vmatpush.xpose.msra.mxu0 0.0
    %759 = vmatpush.xpose.msra.mxu0 0.0
    %760 = vmatpush.xpose.msra.mxu0 0.0
    %761 = vmatpush.xpose.msra.mxu0 0.0
    %762 = vmatpush.xpose.msra.mxu0 0.0
    %763 = vmatpush.xpose.msra.mxu0 0.0
    %764 = vmatpush.xpose.msra.mxu0 0.0
    %765 = vmatpush.xpose.msra.mxu0 0.0
    %766 = vmatpush.xpose.msra.mxu0 0.0
    %767 = vmatpush.xpose.msra.mxu0 0.0
    %768 = vmatpush.xpose.msra.mxu0 0.0
    %769 = vmatpush.xpose.msra.mxu0 0.0
    %770 = vmatpush.xpose.msra.mxu0 %v753
    %771 = vmatmul.f32.gmra.mxu0 %v751
    %v772 = vpop.f32.mrf.mxu0
    %v773 = vadd.f32 0.0, %v772
    %774 = vdwg.mxu0
    %v775 = vsel %vm287, %v745, -1e+30
    %v776 = vsel %vm288, %v773, -1e+30
    %v777 = vsel %vm291, %v775, -inf
    %778 = vmax.xlane.f32.xlu0 %v777
    %v779 = vpop.xlane.xlu0 %778
    %v780 = vsel %vm291, %v776, -inf
    %781 = vmax.xlane.f32.xlu0 %v780
    %v782 = vpop.xlane.xlu0 %781
    %v783 = vsub.f32 %v775, %v779
    %v784 = vsub.f32 %v776, %v782
    %v785 = vmul.f32 %v783, 1.442695
    %v786 = vpow.pop %v785
    %v787 = vmul.f32 %v784, 1.442695
    %v788 = vpow.pop %v787
    %v789 = vsel %vm291, %v786, 0.0
    %790 = vadd.xlane.f32.xlu0 %v789
    %v791 = vpop.xlane.xlu0 %790
    %v792 = vsel %vm291, %v788, 0.0
    %793 = vadd.xlane.f32.xlu0 %v792
    %v794 = vpop.xlane.xlu0 %793
    %v795 = vrcp.pop %v791
    %v796 = vrcp.pop %v794
    %v797 = vmul.f32 %v786, %v795
    %v798 = vmul.f32 %v788, %v796
    %799 = vrot.lane.b32.xlu0 %v163, 32
    %v800 = vpop.permute.xlu0 %799
    %v803 = vsel %vm291, %v797, 0
    %805 = vmatpush.msra.mxu0 0.0
    %806 = vmatpush.msra.mxu0 0.0
    %807 = vmatpush.msra.mxu0 0.0
    %808 = vmatpush.msra.mxu0 0.0
    %809 = vmatpush.msra.mxu0 0.0
    %810 = vmatpush.msra.mxu0 0.0
    %811 = vmatpush.msra.mxu0 0.0
    %812 = vmatpush.msra.mxu0 0.0
    %813 = vmatpush.msra.mxu0 0.0
    %814 = vmatpush.msra.mxu0 0.0
    %815 = vmatpush.msra.mxu0 0.0
    %816 = vmatpush.msra.mxu0 0.0
    %817 = vmatpush.msra.mxu0 0.0
    %818 = vmatpush.msra.mxu0 0.0
    %819 = vmatpush.msra.mxu0 0.0
    %820 = vmatpush.msra.mxu0 %v800
    %821 = vmatmul.f32.gmra.mxu0 %v803
    %v822 = vpop.f32.mrf.mxu0
    %v823 = vadd.f32 0.0, %v822
    %824 = vdwg.mxu0
    %825 = vrot.lane.b32.xlu0 %v165, 32
    %v826 = vpop.permute.xlu0 %825
    %v829 = vsel %vm291, %v798, 0
    %831 = vmatpush.msra.mxu0 0.0
    %832 = vmatpush.msra.mxu0 0.0
    %833 = vmatpush.msra.mxu0 0.0
    %834 = vmatpush.msra.mxu0 0.0
    %835 = vmatpush.msra.mxu0 0.0
    %836 = vmatpush.msra.mxu0 0.0
    %837 = vmatpush.msra.mxu0 0.0
    %838 = vmatpush.msra.mxu0 0.0
    %839 = vmatpush.msra.mxu0 0.0
    %840 = vmatpush.msra.mxu0 0.0
    %841 = vmatpush.msra.mxu0 0.0
    %842 = vmatpush.msra.mxu0 0.0
    %843 = vmatpush.msra.mxu0 0.0
    %844 = vmatpush.msra.mxu0 0.0
    %845 = vmatpush.msra.mxu0 0.0
    %846 = vmatpush.msra.mxu0 %v826
    %847 = vmatmul.f32.gmra.mxu0 %v829
    %v848 = vpop.f32.mrf.mxu0
    %v849 = vadd.f32 0.0, %v848
    %850 = vdwg.mxu0
    %v852 = vsel %vm60, %v823, 0
    %v855 = vsel %vm60, %v849, 0
    %857 = vmatpush.msra.mxu0 0.0
    %858 = vmatpush.msra.mxu0 0.0
    %859 = vmatpush.msra.mxu0 0.0
    %860 = vmatpush.msra.mxu0 0.0
    %861 = vmatpush.msra.mxu0 0.0
    %862 = vmatpush.msra.mxu0 0.0
    %863 = vmatpush.msra.mxu0 0.0
    %864 = vmatpush.msra.mxu0 0.0
    %865 = vmatpush.msra.mxu0 0.0
    %866 = vmatpush.msra.mxu0 0.0
    %867 = vmatpush.msra.mxu0 0.0
    %868 = vmatpush.msra.mxu0 0.0
    %869 = vmatpush.msra.mxu0 %v199
    %870 = vmatpush.msra.mxu0 %v198
    %871 = vmatpush.msra.mxu0 %v197
    %872 = vmatpush.msra.mxu0 %v196
    %873 = vmatmul.f32.gmra.mxu0 %v852
    %v874 = vpop.f32.mrf.mxu0
    %v875 = vadd.f32 0.0, %v874
    %876 = vmatmul.f32.gmra.mxu0 %v855
    %v877 = vpop.f32.mrf.mxu0
    %v878 = vadd.f32 0.0, %v877
    %879 = vdwg.mxu0
    %v880 = vadd.f32 %v717, %v875
    %v881 = vadd.f32 %v718, %v878
    %882 = vst [vmem:[#allocation2] sm:$0xff] %v880
    %883 = vst [vmem:[#allocation2 + $0x8] sm:$0xff] %v881
    // Predicated region
    $region50: #{one_side_inter_modality_update.1} parent=1 // pred_check
      _
    $region51: #{one_side_inter_modality_update.1} parent=1 // pred_check_branch
      %885 = sbr.rel (0) target = $region53
    $region52: #{one_side_inter_modality_update.1} parent=1 // pred_region
      %887 = vsyncadd [#allocation3], 0
      %s888 = sshll.u32 [#allocation2], 4
      %s889 = int_to_ptr.vmem [resolvable:$true] %s888
      %s890 = sshll.u32 %s12, 4
      %s891 = int_to_ptr.hbm [resolvable:$true] %s890
      %896 = dma.vmem_to_hbm [thread:$0]  %s889, 256, %s891, [#allocation3], 128, 128, 8
    $region53: #{one_side_inter_modality_update.1} parent=1 // pred_fallthru
      _
    // Predicated region
    $region54: #{one_side_inter_modality_update.1} parent=1 // pred_check
      _
    $region55: #{one_side_inter_modality_update.1} parent=1 // pred_check_branch
      %898 = sbr.rel (0) target = $region57
    $region56: #{one_side_inter_modality_update.1} parent=1 // pred_region
      %900 = dma.done [#allocation3], 256
    $region57: #{one_side_inter_modality_update.1} parent=1 // pred_fallthru
      _
    %901 = vsyncpa [#allocation3], 1

</llo_original>
